<compile_context>
chip_gen: v6e
topology: v6e:2x2x1
jax: 0.10.0
libtpu: 0.0.40
codegen_flags: <defaults>
</compile_context>

<pallas_src>
import jax
import jax.numpy as jnp
from jax.experimental import pallas as pl
from jax.experimental.pallas import tpu as pltpu


def _dma_copy_kernel(src_hbm_ref, dst_hbm_ref, sem):
    # One HBM->HBM DMA: read + write streamed by the DMA engine, no VMEM.
    cp = pltpu.make_async_copy(src_hbm_ref, dst_hbm_ref, sem)
    cp.start()
    cp.wait()


def _pallas_dma_copy(x: jax.Array) -> jax.Array:
    """Bit-exact copy of `x` into a fresh HBM buffer via a single DMA."""
    return pl.pallas_call(
        _dma_copy_kernel,
        out_shape=jax.ShapeDtypeStruct(x.shape, x.dtype),
        in_specs=[pl.BlockSpec(memory_space=pl.ANY)],
        out_specs=pl.BlockSpec(memory_space=pl.ANY),
        scratch_shapes=[pltpu.SemaphoreType.DMA(())],
    )(x)


def image_sender_forward(image: jax.Array, *, materialize_second: bool = False):
    """Pallas equivalent of image_sender.forward: returns (image, image).

    By default both outputs alias the input array — identical to PyTorch
    returning the same tensor object twice, and zero HBM traffic.
    Set `materialize_second=True` only if a distinct HBM buffer for the
    second output is a hard requirement; then it is produced by one
    HBM->HBM DMA kernel.
    """
    out_a = image
    out_b = _pallas_dma_copy(image) if materialize_second else image
    return out_a, out_b


if __name__ == "__main__":
    key = jax.random.PRNGKey(0)
    # Small NCHW image consistent with the module's forward signature.
    image = jax.random.normal(key, (2, 4, 16, 16), dtype=jnp.float32)

    # Default (optimal) path: both outputs alias the input.
    out_a, out_b = image_sender_forward(image)
    jax.block_until_ready((out_a, out_b))
    assert out_a.shape == image.shape and out_b.shape == image.shape
    assert out_a.dtype == image.dtype and out_b.dtype == image.dtype
    assert jnp.array_equal(out_a, image) and jnp.array_equal(out_b, image)

    # Exercise the Pallas DMA-copy kernel once (distinct-buffer variant).
    out_a2, out_b2 = image_sender_forward(image, materialize_second=True)
    jax.block_until_ready((out_a2, out_b2))
    assert out_b2.shape == image.shape and out_b2.dtype == image.dtype
    assert jnp.array_equal(out_a2, image) and jnp.array_equal(out_b2, image)

    print("KERNEL_OK")
</pallas_src>

<mosaic_0001>
module attributes {stable_mosaic.version = 11 : i64} {
  func.func @_dma_copy_kernel(%arg0: memref<2x4x16x16xf32, #tpu.memory_space<any>>, %arg1: memref<2x4x16x16xf32, #tpu.memory_space<any>>, %arg2: memref<!tpu.dma_semaphore, #tpu.memory_space<semaphore_mem>>) attributes {dimension_semantics = [], scalar_prefetch = 0 : i64, scratch_operands = 1 : i64, tpu.core_type = #tpu.core_type<tc>} {
    tpu.enqueue_dma source(%arg0 : memref<2x4x16x16xf32, #tpu.memory_space<any>>) target(%arg1 : memref<2x4x16x16xf32, #tpu.memory_space<any>>) target_semaphore(%arg2 : memref<!tpu.dma_semaphore, #tpu.memory_space<semaphore_mem>>)
    tpu.wait_dma2 semaphore(%arg2 : memref<!tpu.dma_semaphore, #tpu.memory_space<semaphore_mem>>) src(%arg0 : memref<2x4x16x16xf32, #tpu.memory_space<any>>) dst(%arg1 : memref<2x4x16x16xf32, #tpu.memory_space<any>>)
    return
  }
}

</mosaic_0001>

<llo_original>
// kernel: tpu_custom_call.1
$region0: #{tpu_custom_call.1}
  #allocation0 [shape = 'u32[]', space=smem, size = 0x4, offset = 0x4, fixed_abs, tag = 'smem constant byte address 0x4 - core index']
  #allocation1 [shape = 'u32[144,128]{1,0:T(1,128)}', space=vmem, size = 0x12000, scoped, tag = 'internal scratch']
  #allocation2 [shape = 's32[1]{0}', space=sflag, size = 0x4, scoped, tag = 'scratch operand']
  #allocation3 [shape = 's32[]', space=sflag, size = 0x4, offset = 0, fixed_abs, tag = 'sflag constant byte address 0x0 - dummy sync flag']
  #allocation4 [shape = 'u32[0]{0}', space=smem, size = 0, offset = 0, fixed_abs, tag = 'smem constant byte address 0x0 - null']
  %s0 = inlined_call_operand.hbm [shape: f32[2,4,16,16], index: 0, kind: input, shape index: {}]
  %s1 = inlined_call_operand.hbm [shape: f32[2,4,16,16], index: 1, kind: output, shape index: {}]
  %s2 = sld [smem:[#allocation0]]
  $region2: #{tpu_custom_call.1} parent=0
    _
  %s4 = ssub.s32 1, %s2
  %s5 = scalar_select 0, %s4, %s2
  %s7 = sshll.u32 1, 14
  %s8 = sxor.u32 4294967295, %s7
  %12 = dma.general %s0, 2048, %s1, [#allocation2], 131072, [#allocation4], 0, 0
  %s13 = smul.u32 2, 4
  %s14 = smul.u32 %s13, 16
  %s15 = smul.u32 %s14, 1
  %s16 = sshll.u32 %s15, 4
  %17 = dma.done [#allocation2], %s16
  %18 = vsyncmov [#allocation2]
  %s19 = vpop.sfrf %18
  %p20 = scmp.eq.s32.totalorder %s19, 0
  %p21 = pneg %p20
  %23 = shalt.err (%p21)

</llo_original>
